<compile_context>
chip_gen: v5e
topology: v5e:2x2
jax: 0.10.0
libtpu: 0.0.40
codegen_flags: <defaults>
</compile_context>

<pallas_src>
import jax
import jax.numpy as jnp
from jax import lax
from jax.experimental import pallas as pl
from jax.experimental.pallas import tpu as pltpu


# Geometry implied by the module's use (8x8 board, 7 input planes).
HEIGHT = 8
WIDTH = 8
HW = HEIGHT * WIDTH                 # 64 board positions per image
CIN = 7
CIN_PAD = 8                         # input channels padded to a sublane multiple
CMID = 128                          # hidden channels
K1 = 5                              # first conv kernel size
K3 = 3                              # remaining conv kernel size
K1_DEPTH = K1 * K1 * CIN_PAD        # 200  (im2col depth, layer 1)
K1_DEPTH_PAD = 256                  # padded to a multiple of 128 for aligned MXU K
K3_DEPTH = K3 * K3 * CMID           # 1152 (tap-major weight columns, layers 2..6)

IMGS_PER_STEP = 2                   # 2 images per 128-lane tile (fills a vreg / MXU N)
LANES = IMGS_PER_STEP * HW          # 128

MXU_DTYPE = jnp.bfloat16            # MXU operands; accumulation & VPU math stay f32


# ----------------------------------------------------------------------------
# One-off probe: pin down the rotation direction of pltpu.roll on this backend
# so the static lane shifts below are correct regardless of sign convention.
# ----------------------------------------------------------------------------
_ROLL_MATCHES_NUMPY = None


def _roll_matches_numpy() -> bool:
    global _ROLL_MATCHES_NUMPY
    if _ROLL_MATCHES_NUMPY is None:
        def probe(x_ref, o_ref):
            o_ref[...] = pltpu.roll(x_ref[...], 1, axis=1)
        x = jnp.arange(128, dtype=jnp.float32).reshape(1, 128)
        y = pl.pallas_call(
            probe, out_shape=jax.ShapeDtypeStruct((1, 128), jnp.float32))(x)
        # np.roll semantics: y[0, 0] == x[0, 127].
        _ROLL_MATCHES_NUMPY = bool(float(y[0, 0]) == 127.0)
    return _ROLL_MATCHES_NUMPY


# ----------------------------------------------------------------------------
# Fused kernel: 7x (conv + folded BN + ReLU) + flatten + per-image softmax.
# One grid step processes IMGS_PER_STEP images packed along the lane axis.
# ----------------------------------------------------------------------------
def policy_net_kernel(x_ref, w1_ref, w26_ref, w7_ref, b16_ref, b7_ref, out_ref):
    roll_sign = -1 if _roll_matches_numpy() else 1

    # lane -> (image, h, w) decomposition; constants, computed once.
    lane = lax.broadcasted_iota(jnp.int32, (1, LANES), 1)
    pix = lane % HW
    h = pix // WIDTH
    w = pix % WIDTH

    def shift_lanes(a, s):
        # y[:, l] = a[:, l + s] on valid lanes (wrapped lanes are masked off).
        if s == 0:
            return a
        return pltpu.roll(a, (roll_sign * s) % LANES, axis=1)

    def tap_mask(dh, dw):
        # 'same' zero padding realized purely with masks; valid lanes never
        # wrap or cross the per-image 64-lane segment, so packing is safe.
        return ((h + dh >= 0) & (h + dh < HEIGHT) &
                (w + dw >= 0) & (w + dw < WIDTH))

    # 3x3 tap table (lane shift, validity mask), shared by layers 2..7.
    taps3 = [(dh * WIDTH + dw, tap_mask(dh, dw))
             for dh in (-1, 0, 1) for dw in (-1, 0, 1)]

    # ---- layer 1: 5x5 conv, Cin 7(+1 zero pad) -> 128 -----------------------
    # One deep-K (K=256) MXU matmul against an in-vreg im2col slab.
    x = x_ref[0]                                              # (8, LANES) f32
    pieces = []
    for dh in (-2, -1, 0, 1, 2):
        for dw in (-2, -1, 0, 1, 2):
            pieces.append(jnp.where(tap_mask(dh, dw),
                                    shift_lanes(x, dh * WIDTH + dw), 0.0))
    pieces.append(jnp.zeros((K1_DEPTH_PAD - K1_DEPTH, LANES), jnp.float32))
    patches = jnp.concatenate(pieces, axis=0).astype(MXU_DTYPE)   # (256, LANES)
    y = jnp.dot(w1_ref[...], patches, preferred_element_type=jnp.float32)
    y = jnp.maximum(y + b16_ref[:, 0:1], 0.0)                 # BN scale folded into w1

    # ---- layers 2..6: 3x3 conv, 128 -> 128 ----------------------------------
    # 9 accumulated K=128 matmuls fed straight from vregs (no im2col VMEM
    # round trip -> the single vector-store slot stays free for the pipeline).
    for i in range(5):
        acc = jnp.zeros((CMID, LANES), jnp.float32)
        for t, (s, m) in enumerate(taps3):
            tap = jnp.where(m, shift_lanes(y, s), 0.0).astype(MXU_DTYPE)
            acc = acc + jnp.dot(w26_ref[i, :, t * CMID:(t + 1) * CMID], tap,
                                preferred_element_type=jnp.float32)
        y = jnp.maximum(acc + b16_ref[:, i + 1:i + 2], 0.0)

    # ---- layer 7: 3x3 conv, 128 -> 1: VPU FMA + cross-sublane reduce --------
    acc7 = jnp.zeros((CMID, LANES), jnp.float32)
    for t, (s, m) in enumerate(taps3):
        acc7 = acc7 + jnp.where(m, shift_lanes(y, s), 0.0) * w7_ref[:, t:t + 1]
    logits = jnp.maximum(jnp.sum(acc7, axis=0, keepdims=True) + b7_ref[...], 0.0)

    # ---- flatten + per-image softmax over the 64 board positions ------------
    # A shared max shift is valid for every image's softmax; exact divide.
    e = jnp.exp(logits - jnp.max(logits, axis=-1, keepdims=True))
    denom = jnp.zeros_like(e)
    for img in range(IMGS_PER_STEP):
        seg = (lane // HW) == img
        seg_sum = jnp.sum(jnp.where(seg, e, 0.0), axis=-1, keepdims=True)
        denom = jnp.where(seg, seg_sum, denom)
    out_ref[0] = e / denom


# ----------------------------------------------------------------------------
# Parameter construction (deterministic, synthetic) and packing
# ----------------------------------------------------------------------------
def make_params(key):
    """Conv weights (HWIO) and eval-mode BatchNorm folded to scale/bias."""
    cfg = [(K1, CIN, CMID, 2)] + [(K3, CMID, CMID, 1)] * 5 + [(K3, CMID, 1, 1)]
    eps = 1e-5
    params = []
    for (k, cin, cout, pad) in cfg:
        key, kw_, kb_, kg_, kbe_, km_, kv_ = jax.random.split(key, 7)
        fan_in = cin * k * k
        w = jax.random.normal(kw_, (k, k, cin, cout), jnp.float32) / jnp.sqrt(fan_in)
        conv_b = 0.1 * jax.random.normal(kb_, (cout,), jnp.float32)
        gamma = 1.0 + 0.1 * jax.random.normal(kg_, (cout,), jnp.float32)
        beta = 0.1 * jax.random.normal(kbe_, (cout,), jnp.float32)
        mean = 0.1 * jax.random.normal(km_, (cout,), jnp.float32)
        var = jnp.abs(1.0 + 0.1 * jax.random.normal(kv_, (cout,), jnp.float32))
        # BN(conv(x) + b) = scale*conv(x) + bias
        scale = gamma / jnp.sqrt(var + eps)
        bias = (conv_b - mean) * scale + beta
        params.append({"w": w, "scale": scale, "bias": bias, "pad": pad})
    return params


def pack_params(params):
    """Repack HWIO weights + folded BN into kernel operands.

    Weights are stored transposed, (Cout, tap*Cin), with the BN scale folded
    in, so every conv is MXU matmul(s) against tap-shifted activations and the
    epilogue is just bias + ReLU.
    """
    p1, p26, p7 = params[0], params[1:6], params[6]

    w1 = jnp.pad(p1["w"], ((0, 0), (0, 0), (0, CIN_PAD - CIN), (0, 0)))
    w1_t = w1.reshape(K1_DEPTH, CMID).T * p1["scale"][:, None]          # (128, 200)
    w1_t = jnp.pad(w1_t, ((0, 0), (0, K1_DEPTH_PAD - K1_DEPTH)))        # (128, 256)

    w26_t = jnp.stack([p["w"].reshape(K3_DEPTH, CMID).T * p["scale"][:, None]
                       for p in p26])                                   # (5, 128, 1152)

    w7_t = p7["w"].reshape(K3 * K3, CMID).T * p7["scale"][0]            # (128, 9)

    b16 = jnp.stack([p["bias"] for p in params[:6]], axis=1)            # (128, 6)
    b7 = jnp.full((1, LANES), p7["bias"][0], jnp.float32)               # (1, 128)

    return {"w1": w1_t.astype(MXU_DTYPE),
            "w26": w26_t.astype(MXU_DTYPE),
            "w7": w7_t.astype(jnp.float32),
            "b16": b16.astype(jnp.float32),
            "b7": b7}


# ----------------------------------------------------------------------------
# Forward pass
# ----------------------------------------------------------------------------
@jax.jit
def _forward_jit(x_nchw, packed):
    n = x_nchw.shape[0]
    g = pl.cdiv(n, IMGS_PER_STEP)
    n_pad = g * IMGS_PER_STEP

    # Pack IMGS_PER_STEP images per lane tile: lane = img*64 + (h*8 + w),
    # channels (7 -> 8 zero-padded) on sublanes.
    x = x_nchw.astype(jnp.float32).reshape(n, CIN, HW)
    x = jnp.pad(x, ((0, n_pad - n), (0, CIN_PAD - CIN), (0, 0)))
    x = x.reshape(g, IMGS_PER_STEP, CIN_PAD, HW)
    x = x.transpose(0, 2, 1, 3).reshape(g, CIN_PAD, LANES)

    out = pl.pallas_call(
        policy_net_kernel,
        out_shape=jax.ShapeDtypeStruct((g, 1, LANES), jnp.float32),
        grid=(g,),
        in_specs=[
            pl.BlockSpec((1, CIN_PAD, LANES), lambda i: (i, 0, 0)),   # packed images
            pl.BlockSpec((CMID, K1_DEPTH_PAD), lambda i: (0, 0)),     # w1^T (scale folded)
            pl.BlockSpec((5, CMID, K3_DEPTH), lambda i: (0, 0, 0)),   # w2..w6^T
            pl.BlockSpec((CMID, K3 * K3), lambda i: (0, 0)),          # w7 (cin, tap)
            pl.BlockSpec((CMID, 6), lambda i: (0, 0)),                # biases, layers 1..6
            pl.BlockSpec((1, LANES), lambda i: (0, 0)),               # bias, layer 7
        ],
        out_specs=pl.BlockSpec((1, 1, LANES), lambda i: (i, 0, 0)),   # lane-dense probs
        compiler_params=pltpu.CompilerParams(
            dimension_semantics=("parallel",)),
    )(x, packed["w1"], packed["w26"], packed["w7"], packed["b16"], packed["b7"])

    return out.reshape(n_pad, HW)[:n]


def policy_network_forward(x_nchw, packed):
    assert x_nchw.shape[1:] == (CIN, HEIGHT, WIDTH), "kernel is specialized to 7x8x8 inputs"
    _roll_matches_numpy()           # pin the roll direction before tracing the kernel
    return _forward_jit(x_nchw, packed)


# ----------------------------------------------------------------------------
# Pure-JAX reference (mirrors the PyTorch module in eval mode, with the same
# numerics as the kernel: bf16 MXU operands / f32 accumulation on layers 1..6,
# f32 on layer 7) for a tight correctness check.
# ----------------------------------------------------------------------------
def reference_forward(x_nchw, params):
    y = x_nchw.astype(jnp.float32)
    for li, p in enumerate(params):
        w_eff = p["w"] * p["scale"].reshape(1, 1, 1, -1)      # fold BN scale
        pad = p["pad"]
        if li < 6:
            lhs = y.astype(jnp.bfloat16)
            rhs = jnp.transpose(w_eff, (3, 2, 0, 1)).astype(jnp.bfloat16)
            prec = None
        else:
            lhs = y
            rhs = jnp.transpose(w_eff, (3, 2, 0, 1))
            prec = lax.Precision.HIGHEST
        y = lax.conv_general_dilated(
            lhs, rhs, window_strides=(1, 1),
            padding=[(pad, pad), (pad, pad)],
            dimension_numbers=("NCHW", "OIHW", "NCHW"),
            precision=prec, preferred_element_type=jnp.float32)
        y = jnp.maximum(y + p["bias"].reshape(1, -1, 1, 1), 0.0)
    flat = y.reshape(y.shape[0], -1)
    return jax.nn.softmax(flat, axis=1)


if __name__ == "__main__":
    key = jax.random.PRNGKey(0)
    key_x, key_p = jax.random.split(key)

    n = 4                                        # 2 images/step -> grid=(2,)
    x = jax.random.normal(key_x, (n, CIN, HEIGHT, WIDTH), jnp.float32)

    params = make_params(key_p)
    packed = pack_params(params)

    out = policy_network_forward(x, packed)
    out = jax.block_until_ready(out)

    assert out.shape == (n, HW)
    # Exact softmax divide: rows are probability distributions.
    assert bool(jnp.all(jnp.abs(jnp.sum(out, axis=-1) - 1.0) < 1e-3))
    # Match the precision-matched XLA reference of the same module.
    ref = reference_forward(x, params)
    max_err = float(jnp.max(jnp.abs(out - ref)))
    assert bool(jnp.allclose(out, ref, atol=2e-3, rtol=2e-2)), max_err

    print("KERNEL_OK")
</pallas_src>

<mosaic_0001>
module attributes {stable_mosaic.version = 11 : i64} {
  func.func @probe(%arg0: memref<1x128xf32, #tpu.memory_space<vmem>>, %arg1: memref<1x128xf32, #tpu.memory_space<vmem>>) attributes {dimension_semantics = [], scalar_prefetch = 0 : i64, scratch_operands = 0 : i64, tpu.core_type = #tpu.core_type<tc>} {
    %c0 = arith.constant 0 : index
    %c0_0 = arith.constant 0 : index
    %0 = vector.load %arg0[%c0, %c0_0] : memref<1x128xf32, #tpu.memory_space<vmem>>, vector<1x128xf32>
    %c1_i32 = arith.constant 1 : i32
    %1 = tpu.dynamic_rotate %0 by %c1_i32 dim 1 : vector<1x128xf32>, i32 -> vector<1x128xf32>
    %c0_1 = arith.constant 0 : index
    %c0_2 = arith.constant 0 : index
    %2 = vector.load %arg1[%c0_1, %c0_2] : memref<1x128xf32, #tpu.memory_space<vmem>>, vector<1x128xf32>
    tpu.vector_store %arg1[%c0_1, %c0_2], %1 {strides = array<i32>} : memref<1x128xf32, #tpu.memory_space<vmem>>, vector<1x128xf32>,
    return
  }
}

</mosaic_0001>

<llo_original>
// kernel: tpu_custom_call.1
$region0: #{tpu_custom_call.1}
  #allocation0 [shape = 'u32[]', space=smem, size = 0x4, offset = 0x4, fixed_abs, tag = 'smem constant byte address 0x4 - core index']
  #allocation1 [shape = 'u32[72,128]{1,0:T(1,128)}', space=vmem, size = 0x9000, scoped, tag = 'internal scratch']
  %s0 = inlined_call_operand.hbm [shape: f32[1,128], index: 0, kind: input, shape index: {}]
  %s1 = inlined_call_operand.hbm [shape: f32[1,128], index: 1, kind: output, shape index: {}]
  %s2 = sld [smem:[#allocation0]]
  $region18: #{tpu_custom_call.1} parent=0
    _
  %s4 = ssub.s32 1, %s2
  %s5 = scalar_select 0, %s4, %s2
  $region1: #{tpu_custom_call.1} parent=0
    #allocation2 [shape = 'u8[512]{0}', space=vmem, size = 0x400, scoped, tag = 'input window, operand 0, single buffered']
    #allocation3 [shape = 's32[1]{0}', space=sflag, size = 0x4, scoped, tag = 'scoped memory for tpu_custom_call.1']
    #allocation4 [shape = 's32[1]{0}', space=sflag, size = 0x4, scoped, tag = 'scoped memory for tpu_custom_call.1']
    #allocation5 [shape = 'u8[512]{0}', space=vmem, size = 0x400, scoped, tag = 'output window, operand 0, single buffered']
    %6 = vsyncpa [#allocation3], 0
    %7 = vsyncpa [#allocation4], 0
    // Predicated region
    $region2: #{tpu_custom_call.1} parent=1 // pred_check
      _
    $region3: #{tpu_custom_call.1} parent=1 // pred_check_branch
      %9 = sbr.rel (0) target = $region5
    $region4: #{tpu_custom_call.1} parent=1 // pred_region
      %11 = vsyncadd [#allocation3], 0
      %s13 = sshll.u32 %s0, 4
      %s14 = int_to_ptr.hbm [resolvable:$true] %s13
      %s15 = sshll.u32 [#allocation2], 4
      %s16 = int_to_ptr.vmem [resolvable:$true] %s15
      %18 = dma.hbm_to_vmem [thread:$0]  %s14, 16, %s16, [#allocation3]
    $region5: #{tpu_custom_call.1} parent=1 // pred_fallthru
      _
    // Predicated region
    $region6: #{tpu_custom_call.1} parent=1 // pred_check
      _
    $region7: #{tpu_custom_call.1} parent=1 // pred_check_branch
      %20 = sbr.rel (0) target = $region9
    $region8: #{tpu_custom_call.1} parent=1 // pred_region
      %22 = dma.done [#allocation3], 16
    $region9: #{tpu_custom_call.1} parent=1 // pred_fallthru
      _
    %v23 = vld [vmem:[#allocation2] sm:$0x1]
    %24 = vrot.lane.b32.xlu0 %v23, 1
    %v25 = vpop.permute.xlu0 %24
    %26 = vst [vmem:[#allocation5] sm:$0x1] %v25
    // Predicated region
    $region10: #{tpu_custom_call.1} parent=1 // pred_check
      _
    $region11: #{tpu_custom_call.1} parent=1 // pred_check_branch
      %28 = sbr.rel (0) target = $region13
    $region12: #{tpu_custom_call.1} parent=1 // pred_region
      %30 = vsyncadd [#allocation4], 0
      %s32 = sshll.u32 [#allocation5], 4
      %s33 = int_to_ptr.vmem [resolvable:$true] %s32
      %s34 = sshll.u32 %s1, 4
      %s35 = int_to_ptr.hbm [resolvable:$true] %s34
      %37 = dma.vmem_to_hbm [thread:$0]  %s33, 16, %s35, [#allocation4]
    $region13: #{tpu_custom_call.1} parent=1 // pred_fallthru
      _
    // Predicated region
    $region14: #{tpu_custom_call.1} parent=1 // pred_check
      _
    $region15: #{tpu_custom_call.1} parent=1 // pred_check_branch
      %39 = sbr.rel (0) target = $region17
    $region16: #{tpu_custom_call.1} parent=1 // pred_region
      %41 = dma.done [#allocation4], 16
    $region17: #{tpu_custom_call.1} parent=1 // pred_fallthru
      _
    %42 = vsyncpa [#allocation3], 1
    %43 = vsyncpa [#allocation4], 1

</llo_original>
